<compile_context>
chip_gen: v5e
topology: v5e:2x2
jax: 0.10.0
libtpu: 0.0.40
codegen_flags: <defaults>
</compile_context>

<pallas_src>
import jax
import jax.numpy as jnp
from jax.experimental import pallas as pl
from jax.experimental.pallas import tpu as pltpu


# ---------------------------------------------------------------------------
# Pallas kernel: one f32 GEMM tile, weight resident, lane-dense output
# ---------------------------------------------------------------------------

def _upsample_gemm_kernel(w_ref, x_ref, o_ref):
    # w_ref: (4*Cout, Cin)   f32 — constant index_map -> fetched into VMEM once
    # x_ref: (1, Cin, P)     f32 — natural NCHW slice (pixels are the lane dim)
    # o_ref: (1, 4*Cout, P)  features.dtype
    o_ref[0] = jnp.dot(w_ref[...], x_ref[0],
                       preferred_element_type=jnp.float32).astype(o_ref.dtype)


# ---------------------------------------------------------------------------
# Tile-size helpers
# ---------------------------------------------------------------------------

def _vmem_capacity_bytes():
    try:
        cap = getattr(pltpu.get_tpu_info(), "vmem_capacity_bytes", None)
        if cap:
            return int(cap)
    except Exception:
        pass
    return 64 * 1024 * 1024  # conservative default (v7x per-TC VMEM)


def _pick_p_tile(p_total, p_target):
    """Largest multiple-of-128 divisor of p_total that is <= p_target (else full)."""
    if p_total <= p_target:
        return p_total
    for cand in range((p_target // 128) * 128, 127, -128):
        if p_total % cand == 0:
            return cand
    return p_total  # fallback: whole (H*W) row per step


# ---------------------------------------------------------------------------
# Wrapper
# ---------------------------------------------------------------------------

def upsample_concat(inputs, features, weight):
    """torch.cat([ConvTranspose2d(k=2, s=2, p=0, bias=False)(inputs), features], dim=1).

    inputs:   (N, Cin, H, W)        (NCHW, PyTorch convention)
    features: (N, Cf, 2H, 2W)
    weight:   (Cin, Cout, 2, 2)     (PyTorch ConvTranspose2d layout)
    returns:  (N, Cout + Cf, 2H, 2W) in features.dtype
    """
    n, cin, h, w = inputs.shape
    assert weight.shape[0] == cin and weight.shape[2:] == (2, 2), weight.shape
    cout = weight.shape[1]
    p_total = h * w
    out_dtype = features.dtype
    out_isize = jnp.dtype(out_dtype).itemsize

    # Weight -> (4*Cout, Cin), rows channel-major (co, di, dj).  Tiny tensor,
    # so this wrapper-side transpose is negligible.
    w_r = jnp.transpose(weight, (1, 2, 3, 0)).reshape(4 * cout, cin).astype(jnp.float32)
    # NCHW -> (N, Cin, H*W): contiguous minor-dim merge, no HBM copy.
    x_r = inputs.reshape(n, cin, p_total).astype(jnp.float32)

    # --- per-generation tile sizing (v7x: 64 MiB VMEM/TC, v5e/v6e: 128 MiB) ---
    vmem_limit = max(32 * 1024 * 1024,
                     min(_vmem_capacity_bytes(), 128 * 1024 * 1024) * 3 // 4)
    # live VMEM ≈ weight + 2x double-buffered (x block + y block), all f32-ish
    per_p_bytes = 2 * 2 * 4 * (cin + 4 * cout)
    budget = max(vmem_limit - 4 * cout * cin * 4 - (4 << 20), 1 << 20)
    p_target = max(128, (budget // per_p_bytes) // 128 * 128)
    p_tile = _pick_p_tile(p_total, p_target)
    # v7x megacore: keep >= 2 parallel grid steps so both TensorCores get work.
    if n * (p_total // p_tile) < 2 and p_tile % 256 == 0:
        p_tile //= 2
    grid = (n, p_total // p_tile)

    y = pl.pallas_call(
        _upsample_gemm_kernel,
        out_shape=jax.ShapeDtypeStruct((n, 4 * cout, p_total), out_dtype),
        grid_spec=pltpu.PrefetchScalarGridSpec(
            num_scalar_prefetch=0,
            grid=grid,
            in_specs=[
                # Weight: full array, constant block index -> resident in VMEM.
                pl.BlockSpec((4 * cout, cin), lambda b, j: (0, 0)),
                # Input: one image, all channels, a lane-dense pixel tile.
                pl.BlockSpec((1, cin, p_tile), lambda b, j: (b, 0, j)),
            ],
            out_specs=pl.BlockSpec((1, 4 * cout, p_tile), lambda b, j: (b, 0, j)),
        ),
        compiler_params=pltpu.CompilerParams(
            dimension_semantics=("parallel", "parallel"),
            vmem_limit_bytes=int(vmem_limit),
        ),
        cost_estimate=pl.CostEstimate(
            flops=2 * n * (4 * cout) * cin * p_total,
            transcendentals=0,
            bytes_accessed=(n * cin * p_total * 4          # x read (f32)
                            + 4 * cout * cin * 4           # weight read (once)
                            + n * 4 * cout * p_total * out_isize),  # y write
        ),
    )(w_r, x_r)

    # y[n, (co,di,dj), (h,w)] == up[n, co, 2h+di, 2w+dj].
    up = y.reshape(n, cout, 2, 2, h, w)
    up = jnp.transpose(up, (0, 1, 4, 2, 5, 3)).reshape(n, cout, 2 * h, 2 * w)
    # TODO(synk): the 2x2 spatial interleave + channel concat remain one XLA
    # transpose pass + one concat pass; fully fusing them into the kernel needs
    # an in-VMEM lane interleave (stride-2 vector stores), omitted for lowering
    # safety.
    return jnp.concatenate([up, features], axis=1)


# ---------------------------------------------------------------------------

if __name__ == "__main__":
    key = jax.random.PRNGKey(0)
    k_x, k_f, k_w = jax.random.split(key, 3)

    batch, cin, cout, hw = 2, 8, 4, 16
    inputs = jax.random.normal(k_x, (batch, cin, hw, hw), jnp.float32)
    features = jax.random.normal(k_f, (batch, cout, 2 * hw, 2 * hw), jnp.float32)
    # PyTorch ConvTranspose2d weight layout: (in_channels, out_channels, kH, kW).
    weight = jax.random.normal(k_w, (cin, cout, 2, 2), jnp.float32) / jnp.sqrt(4.0 * cin)

    fwd = jax.jit(upsample_concat)
    out = fwd(inputs, features, weight)
    jax.block_until_ready(out)

    assert out.shape == (batch, 2 * cout, 2 * hw, 2 * hw), out.shape
    assert bool(jnp.all(jnp.isfinite(out)))

    # f32 reference straight from the ConvTranspose2d (k=2, s=2, p=0) definition.
    ref_up = jnp.zeros((batch, cout, 2 * hw, 2 * hw), jnp.float32)
    for di in range(2):
        for dj in range(2):
            tap = jnp.einsum("nchw,cd->ndhw", inputs, weight[:, :, di, dj])
            ref_up = ref_up.at[:, :, di::2, dj::2].set(tap)
    ref = jnp.concatenate([ref_up, features], axis=1)
    max_err = float(jnp.max(jnp.abs(out - ref)))
    assert jnp.allclose(out, ref, rtol=5e-3, atol=5e-3), max_err

    print("KERNEL_OK")
</pallas_src>

<mosaic_0001>
module attributes {stable_mosaic.version = 11 : i64} {
  func.func @_upsample_gemm_kernel(%arg0: i32, %arg1: i32, %arg2: memref<16x8xf32, #tpu.memory_space<vmem>>, %arg3: memref<1x8x256xf32, #tpu.memory_space<vmem>>, %arg4: memref<1x16x256xf32, #tpu.memory_space<vmem>>) attributes {dimension_semantics = [#tpu.dimension_semantics<parallel>, #tpu.dimension_semantics<parallel>], iteration_bounds = array<i64: 2, 1>, scalar_prefetch = 0 : i64, scratch_operands = 0 : i64, tpu.core_type = #tpu.core_type<tc>, window_params = [{pipeline_mode = #tpu.pipeline_mode<synchronous>, transform_indices = @transform_0, window_bounds = array<i64: 16, 8>}, {transform_indices = @transform_1, window_bounds = array<i64: 1, 8, 256>}, {transform_indices = @transform_2, window_bounds = array<i64: 1, 16, 256>}]} {
    %c0 = arith.constant 0 : index
    %c0_0 = arith.constant 0 : index
    %0 = vector.load %arg2[%c0, %c0_0] : memref<16x8xf32, #tpu.memory_space<vmem>>, vector<16x8xf32>
    %c0_1 = arith.constant 0 : index
    %c0_2 = arith.constant 0 : index
    %c0_3 = arith.constant 0 : index
    %1 = vector.load %arg3[%c0_1, %c0_2, %c0_3] : memref<1x8x256xf32, #tpu.memory_space<vmem>>, vector<1x8x256xf32>
    %2 = vector.shape_cast %1 : vector<1x8x256xf32> to vector<8x256xf32>
    %cst = arith.constant dense<0.000000e+00> : vector<16x256xf32>
    %3 = tpu.matmul %0, %2, %cst {dimension_numbers = #tpu.dot_dimension_numbers<[1], [0], [0], [1], [0, 0, 1, 1], [], []>} : vector<16x8xf32>, vector<8x256xf32>, vector<16x256xf32> -> vector<16x256xf32>
    %c0_4 = arith.constant 0 : index
    %c0_5 = arith.constant 0 : index
    %c0_6 = arith.constant 0 : index
    %4 = vector.load %arg4[%c0_4, %c0_5, %c0_6] : memref<1x16x256xf32, #tpu.memory_space<vmem>>, vector<1x16x256xf32>
    %5 = vector.shape_cast %4 : vector<1x16x256xf32> to vector<16x256xf32>
    %6 = vector.shape_cast %3 : vector<16x256xf32> to vector<1x16x256xf32>
    tpu.vector_store %arg4[%c0_4, %c0_5, %c0_6], %6 {strides = array<i32>} : memref<1x16x256xf32, #tpu.memory_space<vmem>>, vector<1x16x256xf32>,
    return
  }
  func.func @transform_0(%arg0: i32, %arg1: i32) -> (i32, i32) {
    %c0_i32 = arith.constant 0 : i32
    %c0_i32_0 = arith.constant 0 : i32
    %c0_i32_1 = arith.constant 0 : i32
    return %c0_i32, %c0_i32_0 : i32, i32
  }
  func.func @transform_1(%arg0: i32, %arg1: i32) -> (i32, i32, i32) {
    %c0_i32 = arith.constant 0 : i32
    %c0_i32_0 = arith.constant 0 : i32
    return %arg0, %c0_i32, %arg1 : i32, i32, i32
  }
  func.func @transform_2(%arg0: i32, %arg1: i32) -> (i32, i32, i32) {
    %c0_i32 = arith.constant 0 : i32
    %c0_i32_0 = arith.constant 0 : i32
    return %arg0, %c0_i32, %arg1 : i32, i32, i32
  }
}

</mosaic_0001>

<llo_original>
// kernel: upsample_concat.1
$region0: #{upsample_concat.1}
  #allocation0 [shape = 'u32[]', space=smem, size = 0x4, offset = 0x4, fixed_abs, tag = 'smem constant byte address 0x4 - core index']
  #allocation1 [shape = 'u32[72,128]{1,0:T(1,128)}', space=vmem, size = 0x9000, scoped, tag = 'internal scratch']
  %s0 = inlined_call_operand.vmem [shape: f32[16,8], index: 0, kind: input, shape index: {}]
  %s1 = inlined_call_operand.vmem [shape: f32[2,8,256], index: 1, kind: input, shape index: {}]
  %s2 = inlined_call_operand.vmem [shape: f32[2,16,256], index: 2, kind: output, shape index: {}]
  %s3 = sld [smem:[#allocation0]]
  $region41: #{upsample_concat.1} parent=0
    _
  %s5 = ssub.s32 1, %s3
  %s6 = scalar_select 0, %s5, %s3
  loop: start=0, step=1, limit=4
  $region2: #{upsample_concat.1} parent=0 // loop_pre_header
    _
  $region3: #{upsample_concat.1} parent=0 // loop_header
    %s8 = sphi 0, %s12
    %p9 = scmp.ge.s32.totalorder %s8, 4
    %s15 = sphi 0, %s27
    %s16 = sphi 0, %s23
    %s17 = sphi 0, %s15
    %s18 = sphi 0, %s16
    %s19 = sphi 0, %s17
    %s20 = sphi 0, %s18
    %s28 = sphi 0, %s28
    %s30 = sphi 0, %s28
    %s31 = sphi 0, %s30
    %s45 = sphi 0, %s31
    %s53 = sphi 0, %s55
    %s56 = sphi 0, %s53
    %s57 = sphi 0, %s56
    %s73 = sphi 0, %s57
    %s81 = sphi 0, %s83
    %s84 = sphi 0, %s81
    %s85 = sphi 0, %s84
    %s101 = sphi 0, %s85
  $region4: #{upsample_concat.1} parent=0 // loop_header_branch
    %11 = sbr.rel (%p9) target = $region8
  $region5: #{upsample_concat.1} parent=0 // loop_body
    %s13 = ssub.s32 %s8, 1
    %s14 = ssub.s32 %s8, 2
    %s21 = sadd.s32 1, %s16
    %p22 = scmp.ge.s32.totalorder %s21, 1
    %s23 = scalar_select %p22, 0, %s21
    %s24 = sadd.s32 1, %s15
    %s25 = scalar_select %p22, %s24, %s15
    %p26 = scmp.ge.s32.totalorder %s25, 2
    %s27 = scalar_select %p26, 0, %s25
    %s29 = sadd.s32 %s28, 1
    %p32 = scmp.eq.s32.totalorder %s8, 1
    %p33 = scmp.ne.s32.totalorder %s28, %s30
    %p34 = scmp.eq.s32.totalorder %s8, 0
    %p35 = por %p33, %p34
    %p36 = scmp.ne.s32.totalorder %s28, %s30
    %p37 = scmp.eq.s32.totalorder %s13, 1
    %p38 = por %p36, %p37
    %p39 = scmp.ne.s32.totalorder %s30, %s31
    %p40 = scmp.eq.s32.totalorder %s13, 0
    %p41 = por %p39, %p40
    %p42 = scmp.ne.s32.totalorder %s30, %s31
    %p43 = scmp.eq.s32.totalorder %s14, 1
    %p44 = por %p42, %p43
    %p46 = scmp.ne.s32.totalorder %s31, %s45
    %p47 = scmp.eq.s32.totalorder %s14, 0
    %p48 = por %p46, %p47
    %s49 = ssub.s32 %s15, %s27
    %s50 = ssub.s32 %s16, %s23
    %s51 = sor.u32 %s49, %s50
    %p52 = scmp.eq.s32.totalorder %s51, 0
    %s54 = sadd.s32 %s53, 1
    %s55 = scalar_select %p52, %s53, %s54
    %p58 = pneg %p52
    %p59 = scmp.eq.s32.totalorder %s8, 1
    %p60 = por %p58, %p59
    %p61 = scmp.ne.s32.totalorder %s53, %s56
    %p62 = scmp.eq.s32.totalorder %s8, 0
    %p63 = por %p61, %p62
    %p64 = scmp.ne.s32.totalorder %s53, %s56
    %p65 = scmp.eq.s32.totalorder %s13, 1
    %p66 = por %p64, %p65
    %p67 = scmp.ne.s32.totalorder %s56, %s57
    %p68 = scmp.eq.s32.totalorder %s13, 0
    %p69 = por %p67, %p68
    %p70 = scmp.ne.s32.totalorder %s56, %s57
    %p71 = scmp.eq.s32.totalorder %s14, 1
    %p72 = por %p70, %p71
    %p74 = scmp.ne.s32.totalorder %s57, %s73
    %p75 = scmp.eq.s32.totalorder %s14, 0
    %p76 = por %p74, %p75
    %s77 = ssub.s32 %s15, %s27
    %s78 = ssub.s32 %s16, %s23
    %s79 = sor.u32 %s77, %s78
    %p80 = scmp.eq.s32.totalorder %s79, 0
    %s82 = sadd.s32 %s81, 1
    %s83 = scalar_select %p80, %s81, %s82
    %p86 = pneg %p80
    %p87 = scmp.eq.s32.totalorder %s8, 1
    %p88 = por %p86, %p87
    %p89 = scmp.ne.s32.totalorder %s81, %s84
    %p90 = scmp.eq.s32.totalorder %s8, 0
    %p91 = por %p89, %p90
    %p92 = scmp.ne.s32.totalorder %s81, %s84
    %p93 = scmp.eq.s32.totalorder %s13, 1
    %p94 = por %p92, %p93
    %p95 = scmp.ne.s32.totalorder %s84, %s85
    %p96 = scmp.eq.s32.totalorder %s13, 0
    %p97 = por %p95, %p96
    %p98 = scmp.ne.s32.totalorder %s84, %s85
    %p99 = scmp.eq.s32.totalorder %s14, 1
    %p100 = por %p98, %p99
    %p102 = scmp.ne.s32.totalorder %s85, %s101
    %p103 = scmp.eq.s32.totalorder %s14, 0
    %p104 = por %p102, %p103
    %p105 = scmp.le.s32.totalorder 1, %s8
    %p106 = scmp.lt.s32.totalorder %s8, 3
    %p107 = pnand %p105, %p106
    %p108 = pneg %p107
    // Predicated region
    $region9: #{upsample_concat.1} parent=5 // pred_check
      _
    $region10: #{upsample_concat.1} parent=5 // pred_check_branch
      %110 = sbr.rel (%p107) target = $region12
    $region11: #{upsample_concat.1} parent=5 // pred_region
      %s111 = ssub.s32 %s8, 1
      // Predicated region
      $region13: #{upsample_concat.1} parent=11 // pred_check
        %p112 = pneg %p41
      $region14: #{upsample_concat.1} parent=11 // pred_check_branch
        %114 = sbr.rel (%p112) target = $region16
      $region15: #{upsample_concat.1} parent=11 // pred_region
        _
      $region16: #{upsample_concat.1} parent=11 // pred_fallthru
        _
    $region12: #{upsample_concat.1} parent=5 // pred_fallthru
      _
    %p115 = scmp.lt.s32.totalorder %s8, 2
    // Predicated region
    $region17: #{upsample_concat.1} parent=5 // pred_check
      %p116 = pneg %p115
    $region18: #{upsample_concat.1} parent=5 // pred_check_branch
      %118 = sbr.rel (%p116) target = $region20
    $region19: #{upsample_concat.1} parent=5 // pred_region
      // Predicated region
      $region21: #{upsample_concat.1} parent=19 // pred_check
        %p119 = pneg %p63
      $region22: #{upsample_concat.1} parent=19 // pred_check_branch
        %121 = sbr.rel (%p119) target = $region24
      $region23: #{upsample_concat.1} parent=19 // pred_region
        %s122 = smul.u32 2, %s16
        %p123 = scmp.lt.s32.totalorder %s15, 1
        %s124 = scalar_select %p123, %s15, 1
        %p125 = scmp.lt.s32.totalorder %s122, 1
        %s126 = scalar_select %p125, %s122, 1
        %s127 = smul.addr %s124, 2
        %s128 = sadd.s32 %s126, %s127
        %s129 = smul.addr %s128, 8
        %s130 = scalar_lea.vmem %s1, %s129
        %s131 = smul.u32 2, %s16
      $region24: #{upsample_concat.1} parent=19 // pred_fallthru
        _
    $region20: #{upsample_concat.1} parent=5 // pred_fallthru
      _
    %p132 = scmp.le.s32.totalorder 1, %s8
    %p133 = scmp.lt.s32.totalorder %s8, 3
    %p134 = pnand %p132, %p133
    %p135 = pneg %p134
    // Predicated region
    $region25: #{upsample_concat.1} parent=5 // pred_check
      _
    $region26: #{upsample_concat.1} parent=5 // pred_check_branch
      %137 = sbr.rel (%p134) target = $region28
    $region27: #{upsample_concat.1} parent=5 // pred_region
      %s138 = ssub.s32 %s8, 1
      %p139 = pneg %p41
      %p140 = pneg %p38
      %s141 = smul.u32 2, %s18
      %p142 = scmp.lt.s32.totalorder %s17, 1
      %s143 = scalar_select %p142, %s17, 1
      %p144 = scmp.lt.s32.totalorder %s141, 1
      %s145 = scalar_select %p144, %s141, 1
      %s146 = smul.addr %s143, 2
      %s147 = sadd.s32 %s145, %s146
      %s148 = smul.addr %s147, 8
      %s149 = scalar_lea.vmem %s1, %s148
      %p150 = pneg %p69
      %p151 = pneg %p66
      %p152 = pneg %p97
      %p153 = pneg %p94
      %s154 = smul.u32 2, %s18
      %p155 = scmp.lt.s32.totalorder %s17, 1
      %s156 = scalar_select %p155, %s17, 1
      %p157 = scmp.lt.s32.totalorder %s154, 1
      %s158 = scalar_select %p157, %s154, 1
      %s159 = smul.addr %s156, 4
      %s160 = sadd.s32 %s158, %s159
      %s161 = smul.addr %s160, 8
      %s162 = scalar_lea.vmem %s2, %s161
      %s163 = smul.u32 2, %s18
      %p164 = scmp.lt.s32.totalorder %s17, 1
      %s165 = scalar_select %p164, %s17, 1
      %p166 = scmp.lt.s32.totalorder %s163, 1
      %s167 = scalar_select %p166, %s163, 1
      %s168 = smul.addr %s165, 2
      %s169 = sadd.s32 %s167, %s168
      %s170 = smul.addr %s169, 8
      %s171 = scalar_lea.vmem %s1, %s170
      %s172 = smul.u32 2, %s18
      %s173 = smul.u32 2, %s18
      %p174 = scmp.lt.s32.totalorder %s17, 1
      %s175 = scalar_select %p174, %s17, 1
      %p176 = scmp.lt.s32.totalorder %s173, 1
      %s177 = scalar_select %p176, %s173, 1
      %s178 = smul.addr %s175, 4
      %s179 = sadd.s32 %s177, %s178
      %s180 = smul.addr %s179, 8
      %s181 = scalar_lea.vmem %s2, %s180
      %s182 = smul.u32 2, %s18
      %v183 = vld [vmem:[%s0] sm:$0xff]
      %v184 = vld [vmem:[%s0 + $0x8] sm:$0xff]
      %v185 = vld [vmem:[%s171] sm:$0xff]
      %v186 = vld [vmem:[%s171 + $0x8] sm:$0xff]
      %vm187 = vcmask 64512
      %v189 = vsel %vm187, %v183, 0
      %v192 = vsel %vm187, %v184, 0
      %194 = vmatpush.msra.mxu0 0.0
      %195 = vmatpush.msra.mxu0 0.0
      %196 = vmatpush.msra.mxu0 0.0
      %197 = vmatpush.msra.mxu0 0.0
      %198 = vmatpush.msra.mxu0 0.0
      %199 = vmatpush.msra.mxu0 0.0
      %200 = vmatpush.msra.mxu0 0.0
      %201 = vmatpush.msra.mxu0 0.0
      %202 = vmatpush.msra.mxu0 0.0
      %203 = vmatpush.msra.mxu0 0.0
      %204 = vmatpush.msra.mxu0 0.0
      %205 = vmatpush.msra.mxu0 0.0
      %206 = vmatpush.msra.mxu0 0.0
      %207 = vmatpush.msra.mxu0 0.0
      %208 = vmatpush.msra.mxu0 0.0
      %209 = vmatpush.msra.mxu0 %v185
      %210 = vmatmul.f32.gmra.mxu0 %v189
      %v211 = vpop.f32.mrf.mxu0
      %v212 = vadd.f32 0.0, %v211
      %213 = vmatmul.f32.gmra.mxu0 %v192
      %v214 = vpop.f32.mrf.mxu0
      %v215 = vadd.f32 0.0, %v214
      %216 = vdwg.mxu0
      %217 = vmatpush.msra.mxu0 0.0
      %218 = vmatpush.msra.mxu0 0.0
      %219 = vmatpush.msra.mxu0 0.0
      %220 = vmatpush.msra.mxu0 0.0
      %221 = vmatpush.msra.mxu0 0.0
      %222 = vmatpush.msra.mxu0 0.0
      %223 = vmatpush.msra.mxu0 0.0
      %224 = vmatpush.msra.mxu0 0.0
      %225 = vmatpush.msra.mxu0 0.0
      %226 = vmatpush.msra.mxu0 0.0
      %227 = vmatpush.msra.mxu0 0.0
      %228 = vmatpush.msra.mxu0 0.0
      %229 = vmatpush.msra.mxu0 0.0
      %230 = vmatpush.msra.mxu0 0.0
      %231 = vmatpush.msra.mxu0 0.0
      %232 = vmatpush.msra.mxu0 %v186
      %233 = vmatmul.f32.gmra.mxu0 %v189
      %v234 = vpop.f32.mrf.mxu0
      %v235 = vadd.f32 0.0, %v234
      %236 = vmatmul.f32.gmra.mxu0 %v192
      %v237 = vpop.f32.mrf.mxu0
      %v238 = vadd.f32 0.0, %v237
      %239 = vdwg.mxu0
      %240 = vst [vmem:[%s181] sm:$0xff] %v212
      %241 = vst [vmem:[%s181 + $0x8] sm:$0xff] %v235
      %242 = vst [vmem:[%s181 + $0x10] sm:$0xff] %v215
      %243 = vst [vmem:[%s181 + $0x18] sm:$0xff] %v238
      %s244 = smul.u32 2, %s18
      %p245 = scmp.lt.s32.totalorder %s17, 1
      %s246 = scalar_select %p245, %s17, 1
      %p247 = scmp.lt.s32.totalorder %s244, 1
      %s248 = scalar_select %p247, %s244, 1
      %s249 = smul.addr %s246, 4
      %s250 = sadd.s32 %s248, %s249
      %s251 = smul.addr %s250, 8
      %s252 = scalar_lea.vmem %s2, %s251
      // Predicated region
      $region29: #{upsample_concat.1} parent=27 // pred_check
        %p253 = pneg %p94
      $region30: #{upsample_concat.1} parent=27 // pred_check_branch
        %255 = sbr.rel (%p253) target = $region32
      $region31: #{upsample_concat.1} parent=27 // pred_region
        %s256 = smul.u32 2, %s18
      $region32: #{upsample_concat.1} parent=27 // pred_fallthru
        _
    $region28: #{upsample_concat.1} parent=5 // pred_fallthru
      _
    %p257 = scmp.le.s32.totalorder 2, %s8
    // Predicated region
    $region33: #{upsample_concat.1} parent=5 // pred_check
      %p258 = pneg %p257
    $region34: #{upsample_concat.1} parent=5 // pred_check_branch
      %260 = sbr.rel (%p258) target = $region36
    $region35: #{upsample_concat.1} parent=5 // pred_region
      %s261 = ssub.s32 %s8, 2
      // Predicated region
      $region37: #{upsample_concat.1} parent=35 // pred_check
        %p262 = pneg %p100
      $region38: #{upsample_concat.1} parent=35 // pred_check_branch
        %264 = sbr.rel (%p262) target = $region40
      $region39: #{upsample_concat.1} parent=35 // pred_region
        %s265 = smul.u32 2, %s20
        %p266 = scmp.lt.s32.totalorder %s19, 1
        %s267 = scalar_select %p266, %s19, 1
        %p268 = scmp.lt.s32.totalorder %s265, 1
        %s269 = scalar_select %p268, %s265, 1
        %s270 = smul.addr %s267, 4
        %s271 = sadd.s32 %s269, %s270
        %s272 = smul.addr %s271, 8
        %s273 = scalar_lea.vmem %s2, %s272
      $region40: #{upsample_concat.1} parent=35 // pred_fallthru
        _
    $region36: #{upsample_concat.1} parent=5 // pred_fallthru
      _
  $region6: #{upsample_concat.1} parent=0 // loop_footer
    %s12 = sadd.s32 1, %s8
  $region7: #{upsample_concat.1} parent=0 // loop_footer_branch
    %7 = sbr.rel target = $region3
  $region8: #{upsample_concat.1} parent=0 // loop_exit
    _

</llo_original>
